<compile_context>
chip_gen: v5e
topology: v5e:2x2
jax: 0.10.0
libtpu: 0.0.40
codegen_flags: <defaults>
</compile_context>

<pallas_src>
import functools

import jax
import jax.numpy as jnp
from jax.experimental import pallas as pl
from jax.experimental.pallas import tpu as pltpu


def _pair(x):
    if isinstance(x, (tuple, list)):
        return tuple(x)
    return (x, x)


def _ceil_div(a, b):
    return -(-a // b)


def _sds(start, size, stride):
    """Strided pl.ds, dropping the stride kwarg when it is irrelevant."""
    if stride == 1 or size == 1:
        return pl.ds(start, size)
    return pl.ds(start, size, stride=stride)


def _tap_ranges(out_size, in_size, k, s, d, p):
    """For each tap m, the [lo, hi) range of output indices whose input index
    s*o + m*d - p lies inside [0, in_size).  All static Python ints."""
    ranges = []
    for m in range(k):
        off = m * d - p
        lo = max(0, _ceil_div(-off, s))
        hi = min(out_size, (in_size - 1 - off) // s + 1)
        ranges.append((lo, max(lo, hi)))
    return ranges


def _segments(out_size, ranges):
    """Partition [0, out_size) into segments with a constant valid-tap set."""
    cuts = {0, out_size}
    for lo, hi in ranges:
        cuts.add(min(max(lo, 0), out_size))
        cuts.add(min(max(hi, 0), out_size))
    cuts = sorted(cuts)
    segs = []
    for a, b in zip(cuts[:-1], cuts[1:]):
        if b <= a:
            continue
        taps = tuple(m for m, (lo, hi) in enumerate(ranges) if lo <= a and b <= hi)
        segs.append((a, b, taps))
    return tuple(segs)


def _w_geometry(W, Wo, kw, sw, dw, pw, itemsize):
    """Placement of the H-reduced intermediate inside its scratch.

    Data columns live at [F, F+W); stage-2 tap n for output col w reads padded
    col (F - pw) + sw*w + n*dw.  F is sublane-aligned (per dtype packing) so
    the big intermediate store is unmasked; only the tiny -inf pad columns
    around the data are extra.
    """
    sub = 8 * max(1, 4 // itemsize)          # f32: 8, bf16: 16, int8: 32
    F = 0 if pw == 0 else _ceil_div(pw, sub) * sub
    w_base = F - pw
    Wpad = max(F + W, w_base + (kw - 1) * dw + sw * (Wo - 1) + 1)
    right_fill = Wpad - (F + W)
    return F, w_base, Wpad, right_fill


def _maxpool_kernel(x_ref, o_ref, hred_ref, *,
                    h_segs, sh, dh, ph, kw, sw, dw,
                    W, F, w_base, right_fill, Wo, neg):
    """x_ref: (H, W, TC) input block -> o_ref: (Ho, Wo, TC) output block."""
    TC = hred_ref.shape[-1]
    Hred = hred_ref.shape[0]
    dt = hred_ref.dtype
    left_fill = F - w_base   # == pw

    # -inf pad columns of the intermediate (tiny; rewritten every step because
    # a program_id gate is not megacore-safe — each core has its own scratch).
    if left_fill > 0:
        hred_ref[:, w_base:F, :] = jnp.full((Hred, left_fill, TC), neg, dt)
    if right_fill > 0:
        hred_ref[:, F + W:F + W + right_fill, :] = jnp.full(
            (Hred, right_fill, TC), neg, dt)

    # Stage 1: H reduction straight off the input block.  Implicit -inf
    # padding along H is analytic: each row segment only touches its valid
    # taps (all indices static), so no padded input plane and no extra copy.
    for a, b, taps in h_segs:
        if not taps:
            hred_ref[a:b, F:F + W, :] = jnp.full((b - a, W, TC), neg, dt)
            continue
        acc = x_ref[_sds(sh * a + taps[0] * dh - ph, b - a, sh), :, :]
        for m in taps[1:]:
            acc = jnp.maximum(acc, x_ref[_sds(sh * a + m * dh - ph, b - a, sh), :, :])
        hred_ref[a:b, F:F + W, :] = acc

    # Stage 2: W reduction over the (W-padded) intermediate with
    # sublane-strided taps; one full-width, aligned output store.
    acc = hred_ref[:, _sds(w_base, Wo, sw), :]
    for n in range(1, kw):
        acc = jnp.maximum(acc, hred_ref[:, _sds(w_base + n * dw, Wo, sw), :])
    o_ref[...] = acc


def _vmem_budget():
    """Generation-aware scoped-VMEM limit and per-step block budget."""
    try:
        phys = int(pltpu.get_tpu_info().vmem_capacity_bytes)
    except Exception:
        phys = 64 * 1024 * 1024                       # conservative (v7x-sized)
    limit = max(32 * 1024 * 1024, (phys * 3) // 4)    # 96 MiB on v5e/v6e, 48 MiB on v7x
    budget = max(16 * 1024 * 1024, limit - 8 * 1024 * 1024)
    return limit, budget


def _choose_c_tile(C, per_channel_bytes, budget_bytes):
    """Lane-dense channel tile (multiple of 128 when C >= 128), as large as
    the generation-aware VMEM budget allows."""
    if C <= 128:
        return C
    cands = [tc for tc in (2048, 1024, 512, 256, 128) if tc <= C]
    for tc in cands:                       # prefer exact divisors (no partial block)
        if C % tc == 0 and tc * per_channel_bytes <= budget_bytes:
            return tc
    for tc in cands:
        if tc * per_channel_bytes <= budget_bytes:
            return tc
    return 128


def _pool_core(x, *, kh, kw, sh, sw, dh, dw, ph, pw, Ho, Wo, neg,
               vmem_limit, budget):
    """One pallas_call over an NHWC input; ph is the effective top pad."""
    N, H, W, C = x.shape
    dtype = x.dtype
    itemsize = jnp.dtype(dtype).itemsize

    F, w_base, Wpad, right_fill = _w_geometry(W, Wo, kw, sw, dw, pw, itemsize)
    h_segs = _segments(Ho, _tap_ranges(Ho, H, kh, sh, dh, ph))

    # Double-buffered in/out blocks + intermediate scratch, per channel.
    per_channel = (2 * H * W + 2 * Ho * Wo + Ho * Wpad) * itemsize
    TC = _choose_c_tile(C, per_channel, budget)

    kernel = functools.partial(
        _maxpool_kernel, h_segs=h_segs, sh=sh, dh=dh, ph=ph, kw=kw, sw=sw,
        dw=dw, W=W, F=F, w_base=w_base, right_fill=right_fill, Wo=Wo, neg=neg)

    return pl.pallas_call(
        kernel,
        out_shape=jax.ShapeDtypeStruct((N, Ho, Wo, C), dtype),
        grid=(N, pl.cdiv(C, TC)),
        in_specs=[pl.BlockSpec((None, H, W, TC), lambda n, c: (n, 0, 0, c))],
        out_specs=pl.BlockSpec((None, Ho, Wo, TC), lambda n, c: (n, 0, 0, c)),
        scratch_shapes=[pltpu.VMEM((Ho, Wpad, TC), dtype)],
        compiler_params=pltpu.CompilerParams(
            dimension_semantics=("parallel", "parallel"),
            vmem_limit_bytes=vmem_limit),
    )(x)


def max_pool2d_nhwc(x_nhwc, kernel_size, stride=None, padding=0, dilation=1,
                    ceil_mode=False, _force_h_slabs=None):
    """Pallas max-pooling on an NHWC input (the native/fast entry point)."""
    kh, kw = _pair(kernel_size)
    sh, sw = _pair(stride if stride is not None else kernel_size)
    ph, pw = _pair(padding)
    dh, dw = _pair(dilation)
    N, H, W, C = x_nhwc.shape
    dtype = x_nhwc.dtype

    def out_size(i, p, d, k, s):
        eff = d * (k - 1) + 1
        num = i + 2 * p - eff
        if ceil_mode:
            o = _ceil_div(num, s) + 1
            # PyTorch rule: last window must start strictly inside input+left pad.
            if (o - 1) * s >= i + p:
                o -= 1
        else:
            o = num // s + 1
        return o

    Ho = out_size(H, ph, dh, kh, sh)
    Wo = out_size(W, pw, dw, kw, sw)
    if Ho <= 0 or Wo <= 0:
        raise ValueError(
            f"Computed output size ({Ho}x{Wo}) is too small for input {H}x{W} "
            f"with kernel={kernel_size}, stride={stride}, padding={padding}, "
            f"dilation={dilation}")

    if jnp.issubdtype(dtype, jnp.floating):
        neg = float("-inf")
    elif jnp.issubdtype(dtype, jnp.integer):
        neg = int(jnp.iinfo(dtype).min)
    else:
        raise TypeError(f"max_pool2d: unsupported dtype {dtype}")

    itemsize = jnp.dtype(dtype).itemsize
    vmem_limit, budget = _vmem_budget()
    _, _, Wpad, _ = _w_geometry(W, Wo, kw, sw, dw, pw, itemsize)
    tc_min = C if C <= 128 else 128

    def fits(ho_s):
        h_s = min(H, (ho_s - 1) * sh + dh * (kh - 1) + 1)
        per_c = (2 * h_s * W + 2 * ho_s * Wo + ho_s * Wpad) * itemsize
        return tc_min * per_c <= budget

    if _force_h_slabs is not None:
        n_slabs = max(1, min(int(_force_h_slabs), Ho))
    else:
        n_slabs = 1
        while not fits(_ceil_div(Ho, n_slabs)) and _ceil_div(Ho, n_slabs) > 1:
            n_slabs *= 2
        n_slabs = min(n_slabs, Ho)

    core = functools.partial(_pool_core, kh=kh, kw=kw, sh=sh, sw=sw, dh=dh,
                             dw=dw, pw=pw, Wo=Wo, neg=neg,
                             vmem_limit=vmem_limit, budget=budget)
    if n_slabs == 1:
        return core(x_nhwc, ph=ph, Ho=Ho)

    # Wrapper-level H-slab fallback: overlapping input row bands, same kernel
    # with an adjusted effective top pad.  Used only when a single call would
    # blow the VMEM budget (and by the forced test below).
    ho_step = _ceil_div(Ho, n_slabs)
    outs = []
    for i in range(n_slabs):
        h0 = i * ho_step
        h1 = min(Ho, h0 + ho_step)
        if h1 <= h0:
            break
        g_lo = sh * h0 - ph
        g_hi = sh * (h1 - 1) + dh * (kh - 1) - ph
        r_lo = max(0, g_lo)
        r_hi = min(H, g_hi + 1)
        ph_eff = ph + r_lo - sh * h0
        x_slab = jax.lax.slice_in_dim(x_nhwc, r_lo, r_hi, axis=1)
        outs.append(core(x_slab, ph=ph_eff, Ho=h1 - h0))
    return jnp.concatenate(outs, axis=1)


def max_pool2d(x, kernel_size, stride=None, padding=0, dilation=1,
               ceil_mode=False, _force_h_slabs=None):
    """F.max_pool2d on an NCHW input (PyTorch layout).

    The two transposes are pure layout glue for interface parity; an
    NHWC-resident model should call `max_pool2d_nhwc` directly and skip both
    HBM relayout passes.
    """
    x_nhwc = jnp.transpose(x, (0, 2, 3, 1))          # NCHW -> NHWC
    out_nhwc = max_pool2d_nhwc(x_nhwc, kernel_size, stride, padding, dilation,
                               ceil_mode, _force_h_slabs=_force_h_slabs)
    return jnp.transpose(out_nhwc, (0, 3, 1, 2))     # NHWC -> NCHW


class MaxPool2d:
    """Mirror of the PyTorch module (no parameters)."""

    def __init__(self, kernel_size, stride=None, padding=0, dilation=1,
                 return_indices=False, ceil_mode=False):
        if return_indices:
            # TODO(synk): return_indices (argmax indices for unpooling) not implemented.
            raise NotImplementedError("return_indices not supported")
        self.kernel_size = kernel_size
        self.stride = stride if stride is not None else kernel_size
        self.padding = padding
        self.dilation = dilation
        self.ceil_mode = ceil_mode

    def __call__(self, x, data_width=8):   # data_width ignored (parity w/ spec)
        return max_pool2d(x, self.kernel_size, self.stride, self.padding,
                          self.dilation, self.ceil_mode)


if __name__ == "__main__":
    key = jax.random.PRNGKey(0)
    k1, k2 = jax.random.split(key)

    N, C, H, W = 2, 4, 16, 16
    x = jax.random.normal(k1, (N, C, H, W), dtype=jnp.float32)

    # --- test 1: 3x3 window, stride 2, padding 1 (analytic H pad + W pad) ---
    out = jax.block_until_ready(MaxPool2d(3, stride=2, padding=1)(x))
    ref = jax.lax.reduce_window(
        x, -jnp.inf, jax.lax.max,
        window_dimensions=(1, 1, 3, 3), window_strides=(1, 1, 2, 2),
        padding=((0, 0), (0, 0), (1, 1), (1, 1)),
        window_dilation=(1, 1, 1, 1))
    assert out.shape == ref.shape, (out.shape, ref.shape)
    assert jnp.allclose(out, ref), "mismatch vs reference (3x3 s2 p1)"

    # --- test 2: non-square window, asymmetric stride/pad, dilation > 1 -----
    out2 = jax.block_until_ready(
        MaxPool2d((3, 2), stride=(2, 1), padding=(1, 0), dilation=(2, 1))(x))
    ref2 = jax.lax.reduce_window(
        x, -jnp.inf, jax.lax.max,
        window_dimensions=(1, 1, 3, 2), window_strides=(1, 1, 2, 1),
        padding=((0, 0), (0, 0), (1, 1), (0, 0)),
        window_dilation=(1, 1, 2, 1))
    assert out2.shape == ref2.shape, (out2.shape, ref2.shape)
    assert jnp.allclose(out2, ref2), "mismatch vs reference (dilated)"

    # --- test 3: C >= 128 exercises lane-dense channel tiling, no padding ---
    x3 = jax.random.normal(k2, (2, 256, 8, 8), dtype=jnp.float32)
    out3 = jax.block_until_ready(MaxPool2d(2, stride=2)(x3))
    ref3 = jax.lax.reduce_window(
        x3, -jnp.inf, jax.lax.max,
        window_dimensions=(1, 1, 2, 2), window_strides=(1, 1, 2, 2),
        padding=((0, 0), (0, 0), (0, 0), (0, 0)),
        window_dilation=(1, 1, 1, 1))
    assert out3.shape == ref3.shape, (out3.shape, ref3.shape)
    assert jnp.allclose(out3, ref3), "mismatch vs reference (C=256, 2x2 s2)"

    # --- test 4: ceil_mode (bottom/right window overhang) -------------------
    out4 = jax.block_until_ready(MaxPool2d(3, stride=2, ceil_mode=True)(x))
    ref4 = jax.lax.reduce_window(
        x, -jnp.inf, jax.lax.max,
        window_dimensions=(1, 1, 3, 3), window_strides=(1, 1, 2, 2),
        padding=((0, 0), (0, 0), (0, 1), (0, 1)),
        window_dilation=(1, 1, 1, 1))
    assert out4.shape == ref4.shape, (out4.shape, ref4.shape)
    assert jnp.allclose(out4, ref4), "mismatch vs reference (ceil_mode)"

    # --- test 5: forced H-slab fallback path (VMEM-bounding code path) ------
    out5 = jax.block_until_ready(
        max_pool2d(x, 3, stride=2, padding=1, _force_h_slabs=3))
    assert out5.shape == ref.shape, (out5.shape, ref.shape)
    assert jnp.allclose(out5, ref), "mismatch vs reference (H-slab fallback)"

    print("KERNEL_OK")
</pallas_src>

<mosaic_0001>
module attributes {stable_mosaic.version = 11 : i64} {
  func.func @_maxpool_kernel(%arg0: i32, %arg1: i32, %arg2: memref<1x16x16x4xf32, #tpu.memory_space<vmem>>, %arg3: memref<1x8x8x4xf32, #tpu.memory_space<vmem>>, %arg4: memref<8x24x4xf32, #tpu.memory_space<vmem>>) attributes {dimension_semantics = [#tpu.dimension_semantics<parallel>, #tpu.dimension_semantics<parallel>], iteration_bounds = array<i64: 2, 1>, scalar_prefetch = 0 : i64, scratch_operands = 1 : i64, tpu.core_type = #tpu.core_type<tc>, window_params = [{transform_indices = @transform_0, window_bounds = array<i64: 1, 16, 16, 4>}, {transform_indices = @transform_1, window_bounds = array<i64: 1, 8, 8, 4>}]} {
    %cst = arith.constant 0xFF800000 : f32
    %0 = vector.broadcast %cst : f32 to vector<8x1x4xf32>
    %c0 = arith.constant 0 : index
    %c7 = arith.constant 7 : index
    %c0_0 = arith.constant 0 : index
    %1 = vector.load %arg4[%c0, %c7, %c0_0] : memref<8x24x4xf32, #tpu.memory_space<vmem>>, vector<8x1x4xf32>
    tpu.vector_store %arg4[%c0, %c7, %c0_0], %0 {strides = array<i32>} : memref<8x24x4xf32, #tpu.memory_space<vmem>>, vector<8x1x4xf32>,
    %c0_1 = arith.constant 0 : index
    %c0_2 = arith.constant 0 : index
    %c0_3 = arith.constant 0 : index
    %c0_4 = arith.constant 0 : index
    %2 = vector.load %arg2[%c0_1, %c0_2, %c0_3, %c0_4] : memref<1x16x16x4xf32, #tpu.memory_space<vmem>>, vector<1x1x16x4xf32>
    %3 = vector.shape_cast %2 : vector<1x1x16x4xf32> to vector<1x16x4xf32>
    %c0_5 = arith.constant 0 : index
    %c1 = arith.constant 1 : index
    %c0_6 = arith.constant 0 : index
    %c0_7 = arith.constant 0 : index
    %4 = vector.load %arg2[%c0_5, %c1, %c0_6, %c0_7] : memref<1x16x16x4xf32, #tpu.memory_space<vmem>>, vector<1x1x16x4xf32>
    %5 = vector.shape_cast %4 : vector<1x1x16x4xf32> to vector<1x16x4xf32>
    %6 = arith.maximumf %3, %5 : vector<1x16x4xf32>
    %c0_8 = arith.constant 0 : index
    %c8 = arith.constant 8 : index
    %c0_9 = arith.constant 0 : index
    %7 = vector.load %arg4[%c0_8, %c8, %c0_9] : memref<8x24x4xf32, #tpu.memory_space<vmem>>, vector<1x16x4xf32>
    tpu.vector_store %arg4[%c0_8, %c8, %c0_9], %6 {strides = array<i32>} : memref<8x24x4xf32, #tpu.memory_space<vmem>>, vector<1x16x4xf32>,
    %c0_10 = arith.constant 0 : index
    %c1_11 = arith.constant 1 : index
    %c0_12 = arith.constant 0 : index
    %c0_13 = arith.constant 0 : index
    %8 = tpu.strided_load %arg2[%c0_10, %c1_11, %c0_12, %c0_13] {strides = array<i32: 1, 2, 1, 1>} : memref<1x16x16x4xf32, #tpu.memory_space<vmem>>, vector<1x7x16x4xf32>
    %9 = vector.shape_cast %8 : vector<1x7x16x4xf32> to vector<7x16x4xf32>
    %c0_14 = arith.constant 0 : index
    %c2 = arith.constant 2 : index
    %c0_15 = arith.constant 0 : index
    %c0_16 = arith.constant 0 : index
    %10 = tpu.strided_load %arg2[%c0_14, %c2, %c0_15, %c0_16] {strides = array<i32: 1, 2, 1, 1>} : memref<1x16x16x4xf32, #tpu.memory_space<vmem>>, vector<1x7x16x4xf32>
    %11 = vector.shape_cast %10 : vector<1x7x16x4xf32> to vector<7x16x4xf32>
    %12 = arith.maximumf %9, %11 : vector<7x16x4xf32>
    %c0_17 = arith.constant 0 : index
    %c3 = arith.constant 3 : index
    %c0_18 = arith.constant 0 : index
    %c0_19 = arith.constant 0 : index
    %13 = tpu.strided_load %arg2[%c0_17, %c3, %c0_18, %c0_19] {strides = array<i32: 1, 2, 1, 1>} : memref<1x16x16x4xf32, #tpu.memory_space<vmem>>, vector<1x7x16x4xf32>
    %14 = vector.shape_cast %13 : vector<1x7x16x4xf32> to vector<7x16x4xf32>
    %15 = arith.maximumf %12, %14 : vector<7x16x4xf32>
    %c1_20 = arith.constant 1 : index
    %c8_21 = arith.constant 8 : index
    %c0_22 = arith.constant 0 : index
    %16 = vector.load %arg4[%c1_20, %c8_21, %c0_22] : memref<8x24x4xf32, #tpu.memory_space<vmem>>, vector<7x16x4xf32>
    tpu.vector_store %arg4[%c1_20, %c8_21, %c0_22], %15 {strides = array<i32>} : memref<8x24x4xf32, #tpu.memory_space<vmem>>, vector<7x16x4xf32>,
    %c0_23 = arith.constant 0 : index
    %c7_24 = arith.constant 7 : index
    %c0_25 = arith.constant 0 : index
    %17 = tpu.strided_load %arg4[%c0_23, %c7_24, %c0_25] {strides = array<i32: 1, 2, 1>} : memref<8x24x4xf32, #tpu.memory_space<vmem>>, vector<8x8x4xf32>
    %c0_26 = arith.constant 0 : index
    %c8_27 = arith.constant 8 : index
    %c0_28 = arith.constant 0 : index
    %18 = tpu.strided_load %arg4[%c0_26, %c8_27, %c0_28] {strides = array<i32: 1, 2, 1>} : memref<8x24x4xf32, #tpu.memory_space<vmem>>, vector<8x8x4xf32>
    %19 = arith.maximumf %17, %18 : vector<8x8x4xf32>
    %c0_29 = arith.constant 0 : index
    %c9 = arith.constant 9 : index
    %c0_30 = arith.constant 0 : index
    %20 = tpu.strided_load %arg4[%c0_29, %c9, %c0_30] {strides = array<i32: 1, 2, 1>} : memref<8x24x4xf32, #tpu.memory_space<vmem>>, vector<8x8x4xf32>
    %21 = arith.maximumf %19, %20 : vector<8x8x4xf32>
    %c0_31 = arith.constant 0 : index
    %c0_32 = arith.constant 0 : index
    %c0_33 = arith.constant 0 : index
    %c0_34 = arith.constant 0 : index
    %22 = vector.load %arg3[%c0_31, %c0_32, %c0_33, %c0_34] : memref<1x8x8x4xf32, #tpu.memory_space<vmem>>, vector<1x8x8x4xf32>
    %23 = vector.shape_cast %22 : vector<1x8x8x4xf32> to vector<8x8x4xf32>
    %24 = vector.shape_cast %21 : vector<8x8x4xf32> to vector<1x8x8x4xf32>
    tpu.vector_store %arg3[%c0_31, %c0_32, %c0_33, %c0_34], %24 {strides = array<i32>} : memref<1x8x8x4xf32, #tpu.memory_space<vmem>>, vector<1x8x8x4xf32>,
    return
  }
  func.func @transform_0(%arg0: i32, %arg1: i32) -> (i32, i32, i32, i32) {
    %c0_i32 = arith.constant 0 : i32
    %c0_i32_0 = arith.constant 0 : i32
    %c0_i32_1 = arith.constant 0 : i32
    return %arg0, %c0_i32, %c0_i32_0, %arg1 : i32, i32, i32, i32
  }
  func.func @transform_1(%arg0: i32, %arg1: i32) -> (i32, i32, i32, i32) {
    %c0_i32 = arith.constant 0 : i32
    %c0_i32_0 = arith.constant 0 : i32
    %c0_i32_1 = arith.constant 0 : i32
    return %arg0, %c0_i32, %c0_i32_0, %arg1 : i32, i32, i32, i32
  }
}

</mosaic_0001>

<llo_original>
// kernel: tpu_custom_call.1
$region0: #{tpu_custom_call.1}
  #allocation0 [shape = 'u32[]', space=smem, size = 0x4, offset = 0x4, fixed_abs, tag = 'smem constant byte address 0x4 - core index']
  #allocation1 [shape = 'u32[72,128]{1,0:T(1,128)}', space=vmem, size = 0x9000, scoped, tag = 'internal scratch']
  #allocation2 [shape = 'f32[8,24,4]{2,1,0:T(8,128)}', space=vmem, size = 0x18000, scoped, tag = 'scratch operand']
  %s0 = inlined_call_operand.vmem [shape: f32[2,16,16,4], index: 0, kind: input, shape index: {}]
  %s1 = inlined_call_operand.vmem [shape: f32[2,8,8,4], index: 1, kind: output, shape index: {}]
  %s2 = sld [smem:[#allocation0]]
  $region37: #{tpu_custom_call.1} parent=0
    _
  %s4 = ssub.s32 1, %s2
  %s5 = scalar_select 0, %s4, %s2
  loop: start=0, step=1, limit=4
  $region2: #{tpu_custom_call.1} parent=0 // loop_pre_header
    _
  $region3: #{tpu_custom_call.1} parent=0 // loop_header
    %s7 = sphi 0, %s11
    %p8 = scmp.ge.s32.totalorder %s7, 4
    %s14 = sphi 0, %s26
    %s15 = sphi 0, %s22
    %s16 = sphi 0, %s14
    %s17 = sphi 0, %s15
    %s18 = sphi 0, %s16
    %s19 = sphi 0, %s17
    %s31 = sphi 0, %s33
    %s34 = sphi 0, %s31
    %s35 = sphi 0, %s34
    %s51 = sphi 0, %s35
    %s59 = sphi 0, %s61
    %s62 = sphi 0, %s59
    %s63 = sphi 0, %s62
    %s79 = sphi 0, %s63
  $region4: #{tpu_custom_call.1} parent=0 // loop_header_branch
    %10 = sbr.rel (%p8) target = $region8
  $region5: #{tpu_custom_call.1} parent=0 // loop_body
    %s12 = ssub.s32 %s7, 1
    %s13 = ssub.s32 %s7, 2
    %s20 = sadd.s32 1, %s15
    %p21 = scmp.ge.s32.totalorder %s20, 1
    %s22 = scalar_select %p21, 0, %s20
    %s23 = sadd.s32 1, %s14
    %s24 = scalar_select %p21, %s23, %s14
    %p25 = scmp.ge.s32.totalorder %s24, 2
    %s26 = scalar_select %p25, 0, %s24
    %s27 = ssub.s32 %s14, %s26
    %s28 = ssub.s32 %s15, %s22
    %s29 = sor.u32 %s27, %s28
    %p30 = scmp.eq.s32.totalorder %s29, 0
    %s32 = sadd.s32 %s31, 1
    %s33 = scalar_select %p30, %s31, %s32
    %p36 = pneg %p30
    %p37 = scmp.eq.s32.totalorder %s7, 1
    %p38 = por %p36, %p37
    %p39 = scmp.ne.s32.totalorder %s31, %s34
    %p40 = scmp.eq.s32.totalorder %s7, 0
    %p41 = por %p39, %p40
    %p42 = scmp.ne.s32.totalorder %s31, %s34
    %p43 = scmp.eq.s32.totalorder %s12, 1
    %p44 = por %p42, %p43
    %p45 = scmp.ne.s32.totalorder %s34, %s35
    %p46 = scmp.eq.s32.totalorder %s12, 0
    %p47 = por %p45, %p46
    %p48 = scmp.ne.s32.totalorder %s34, %s35
    %p49 = scmp.eq.s32.totalorder %s13, 1
    %p50 = por %p48, %p49
    %p52 = scmp.ne.s32.totalorder %s35, %s51
    %p53 = scmp.eq.s32.totalorder %s13, 0
    %p54 = por %p52, %p53
    %s55 = ssub.s32 %s14, %s26
    %s56 = ssub.s32 %s15, %s22
    %s57 = sor.u32 %s55, %s56
    %p58 = scmp.eq.s32.totalorder %s57, 0
    %s60 = sadd.s32 %s59, 1
    %s61 = scalar_select %p58, %s59, %s60
    %p64 = pneg %p58
    %p65 = scmp.eq.s32.totalorder %s7, 1
    %p66 = por %p64, %p65
    %p67 = scmp.ne.s32.totalorder %s59, %s62
    %p68 = scmp.eq.s32.totalorder %s7, 0
    %p69 = por %p67, %p68
    %p70 = scmp.ne.s32.totalorder %s59, %s62
    %p71 = scmp.eq.s32.totalorder %s12, 1
    %p72 = por %p70, %p71
    %p73 = scmp.ne.s32.totalorder %s62, %s63
    %p74 = scmp.eq.s32.totalorder %s12, 0
    %p75 = por %p73, %p74
    %p76 = scmp.ne.s32.totalorder %s62, %s63
    %p77 = scmp.eq.s32.totalorder %s13, 1
    %p78 = por %p76, %p77
    %p80 = scmp.ne.s32.totalorder %s63, %s79
    %p81 = scmp.eq.s32.totalorder %s13, 0
    %p82 = por %p80, %p81
    %p83 = scmp.le.s32.totalorder 1, %s7
    %p84 = scmp.lt.s32.totalorder %s7, 3
    %p85 = pnand %p83, %p84
    %p86 = pneg %p85
    // Predicated region
    $region9: #{tpu_custom_call.1} parent=5 // pred_check
      _
    $region10: #{tpu_custom_call.1} parent=5 // pred_check_branch
      %88 = sbr.rel (%p85) target = $region12
    $region11: #{tpu_custom_call.1} parent=5 // pred_region
      %s89 = ssub.s32 %s7, 1
    $region12: #{tpu_custom_call.1} parent=5 // pred_fallthru
      _
    %p90 = scmp.lt.s32.totalorder %s7, 2
    // Predicated region
    $region13: #{tpu_custom_call.1} parent=5 // pred_check
      %p91 = pneg %p90
    $region14: #{tpu_custom_call.1} parent=5 // pred_check_branch
      %93 = sbr.rel (%p91) target = $region16
    $region15: #{tpu_custom_call.1} parent=5 // pred_region
      // Predicated region
      $region17: #{tpu_custom_call.1} parent=15 // pred_check
        %p94 = pneg %p41
      $region18: #{tpu_custom_call.1} parent=15 // pred_check_branch
        %96 = sbr.rel (%p94) target = $region20
      $region19: #{tpu_custom_call.1} parent=15 // pred_region
        %p97 = scmp.lt.s32.totalorder %s14, 1
        %s98 = scalar_select %p97, %s14, 1
        %p99 = scmp.lt.s32.totalorder %s15, 0
        %s100 = scalar_select %p99, %s15, 0
        %s101 = smul.addr %s98, 32
        %s102 = sadd.s32 %s100, %s101
        %s103 = smul.addr %s102, 8
        %s104 = scalar_lea.vmem %s0, %s103
      $region20: #{tpu_custom_call.1} parent=15 // pred_fallthru
        _
    $region16: #{tpu_custom_call.1} parent=5 // pred_fallthru
      _
    %p105 = scmp.le.s32.totalorder 1, %s7
    %p106 = scmp.lt.s32.totalorder %s7, 3
    %p107 = pnand %p105, %p106
    %p108 = pneg %p107
    // Predicated region
    $region21: #{tpu_custom_call.1} parent=5 // pred_check
      _
    $region22: #{tpu_custom_call.1} parent=5 // pred_check_branch
      %110 = sbr.rel (%p107) target = $region24
    $region23: #{tpu_custom_call.1} parent=5 // pred_region
      %s111 = ssub.s32 %s7, 1
      %p112 = scmp.lt.s32.totalorder %s16, 1
      %s113 = scalar_select %p112, %s16, 1
      %p114 = scmp.lt.s32.totalorder %s17, 0
      %s115 = scalar_select %p114, %s17, 0
      %s116 = smul.addr %s113, 32
      %s117 = sadd.s32 %s115, %s116
      %s118 = smul.addr %s117, 8
      %s119 = scalar_lea.vmem %s0, %s118
      %p120 = pneg %p47
      %p121 = pneg %p44
      %p122 = pneg %p75
      %p123 = pneg %p72
      %p124 = scmp.lt.s32.totalorder %s16, 1
      %s125 = scalar_select %p124, %s16, 1
      %p126 = scmp.lt.s32.totalorder %s17, 0
      %s127 = scalar_select %p126, %s17, 0
      %s128 = smul.addr %s125, 8
      %s129 = sadd.s32 %s127, %s128
      %s130 = smul.addr %s129, 8
      %s131 = scalar_lea.vmem %s1, %s130
      %p132 = scmp.lt.s32.totalorder %s16, 1
      %s133 = scalar_select %p132, %s16, 1
      %p134 = scmp.lt.s32.totalorder %s17, 0
      %s135 = scalar_select %p134, %s17, 0
      %s136 = smul.addr %s133, 32
      %s137 = sadd.s32 %s135, %s136
      %s138 = smul.addr %s137, 8
      %s139 = scalar_lea.vmem %s0, %s138
      %p140 = scmp.lt.s32.totalorder %s16, 1
      %s141 = scalar_select %p140, %s16, 1
      %p142 = scmp.lt.s32.totalorder %s17, 0
      %s143 = scalar_select %p142, %s17, 0
      %s144 = smul.addr %s141, 8
      %s145 = sadd.s32 %s143, %s144
      %s146 = smul.addr %s145, 8
      %s147 = scalar_lea.vmem %s1, %s146
      %vm148 = vcmask 24576
      %149 = vst.msk [vmem:[#allocation2 + $0x7] sm:$0x1] %vm148, -inf
      %150 = vst.msk [vmem:[#allocation2 + $0x1f] sm:$0x1] %vm148, -inf
      %151 = vst.msk [vmem:[#allocation2 + $0x37] sm:$0x1] %vm148, -inf
      %152 = vst.msk [vmem:[#allocation2 + $0x4f] sm:$0x1] %vm148, -inf
      %153 = vst.msk [vmem:[#allocation2 + $0x67] sm:$0x1] %vm148, -inf
      %154 = vst.msk [vmem:[#allocation2 + $0x7f] sm:$0x1] %vm148, -inf
      %155 = vst.msk [vmem:[#allocation2 + $0x97] sm:$0x1] %vm148, -inf
      %156 = vst.msk [vmem:[#allocation2 + $0xaf] sm:$0x1] %vm148, -inf
      %v157 = vld [vmem:[%s139] sm:$0xff]
      %v158 = vld [vmem:[%s139 + $0x8] sm:$0xff]
      %s159 = scalar_lea.vmem %s139, 16
      %v160 = vld [vmem:[%s159] sm:$0xff]
      %v161 = vld [vmem:[%s159 + $0x8] sm:$0xff]
      %v162 = vmax.f32 %v157, %v160
      %v163 = vmax.f32 %v158, %v161
      %vm164 = vcmask 31744
      %165 = vst.msk [vmem:[#allocation2 + $0x8] sm:$0xff] %vm164, %v162
      %166 = vst.msk [vmem:[#allocation2 + $0x10] sm:$0xff] %vm164, %v163
      %v167 = vld [vmem:[%s159] sm:$0xff]
      %v168 = vld [vmem:[%s159 + $0x8] sm:$0xff]
      %v169 = vld [vmem:[%s159 + $0x20] sm:$0xff]
      %v170 = vld [vmem:[%s159 + $0x28] sm:$0xff]
      %v171 = vld [vmem:[%s159 + $0x40] sm:$0xff]
      %v172 = vld [vmem:[%s159 + $0x48] sm:$0xff]
      %v173 = vld [vmem:[%s159 + $0x60] sm:$0xff]
      %v174 = vld [vmem:[%s159 + $0x68] sm:$0xff]
      %v175 = vld [vmem:[%s159 + $0x80] sm:$0xff]
      %v176 = vld [vmem:[%s159 + $0x88] sm:$0xff]
      %v177 = vld [vmem:[%s159 + $0xa0] sm:$0xff]
      %v178 = vld [vmem:[%s159 + $0xa8] sm:$0xff]
      %v179 = vld [vmem:[%s159 + $0xc0] sm:$0xff]
      %v180 = vld [vmem:[%s159 + $0xc8] sm:$0xff]
      %s181 = scalar_lea.vmem %s139, 32
      %v182 = vld [vmem:[%s181] sm:$0xff]
      %v183 = vld [vmem:[%s181 + $0x8] sm:$0xff]
      %v184 = vld [vmem:[%s181 + $0x20] sm:$0xff]
      %v185 = vld [vmem:[%s181 + $0x28] sm:$0xff]
      %v186 = vld [vmem:[%s181 + $0x40] sm:$0xff]
      %v187 = vld [vmem:[%s181 + $0x48] sm:$0xff]
      %v188 = vld [vmem:[%s181 + $0x60] sm:$0xff]
      %v189 = vld [vmem:[%s181 + $0x68] sm:$0xff]
      %v190 = vld [vmem:[%s181 + $0x80] sm:$0xff]
      %v191 = vld [vmem:[%s181 + $0x88] sm:$0xff]
      %v192 = vld [vmem:[%s181 + $0xa0] sm:$0xff]
      %v193 = vld [vmem:[%s181 + $0xa8] sm:$0xff]
      %v194 = vld [vmem:[%s181 + $0xc0] sm:$0xff]
      %v195 = vld [vmem:[%s181 + $0xc8] sm:$0xff]
      %v196 = vmax.f32 %v167, %v182
      %v197 = vmax.f32 %v168, %v183
      %v198 = vmax.f32 %v169, %v184
      %v199 = vmax.f32 %v170, %v185
      %v200 = vmax.f32 %v171, %v186
      %v201 = vmax.f32 %v172, %v187
      %v202 = vmax.f32 %v173, %v188
      %v203 = vmax.f32 %v174, %v189
      %v204 = vmax.f32 %v175, %v190
      %v205 = vmax.f32 %v176, %v191
      %v206 = vmax.f32 %v177, %v192
      %v207 = vmax.f32 %v178, %v193
      %v208 = vmax.f32 %v179, %v194
      %v209 = vmax.f32 %v180, %v195
      %s210 = scalar_lea.vmem %s139, 48
      %v211 = vld [vmem:[%s210] sm:$0xff]
      %v212 = vld [vmem:[%s210 + $0x8] sm:$0xff]
      %v213 = vld [vmem:[%s210 + $0x20] sm:$0xff]
      %v214 = vld [vmem:[%s210 + $0x28] sm:$0xff]
      %v215 = vld [vmem:[%s210 + $0x40] sm:$0xff]
      %v216 = vld [vmem:[%s210 + $0x48] sm:$0xff]
      %v217 = vld [vmem:[%s210 + $0x60] sm:$0xff]
      %v218 = vld [vmem:[%s210 + $0x68] sm:$0xff]
      %v219 = vld [vmem:[%s210 + $0x80] sm:$0xff]
      %v220 = vld [vmem:[%s210 + $0x88] sm:$0xff]
      %v221 = vld [vmem:[%s210 + $0xa0] sm:$0xff]
      %v222 = vld [vmem:[%s210 + $0xa8] sm:$0xff]
      %v223 = vld [vmem:[%s210 + $0xc0] sm:$0xff]
      %v224 = vld [vmem:[%s210 + $0xc8] sm:$0xff]
      %v225 = vmax.f32 %v196, %v211
      %v226 = vmax.f32 %v197, %v212
      %v227 = vmax.f32 %v198, %v213
      %v228 = vmax.f32 %v199, %v214
      %v229 = vmax.f32 %v200, %v215
      %v230 = vmax.f32 %v201, %v216
      %v231 = vmax.f32 %v202, %v217
      %v232 = vmax.f32 %v203, %v218
      %v233 = vmax.f32 %v204, %v219
      %v234 = vmax.f32 %v205, %v220
      %v235 = vmax.f32 %v206, %v221
      %v236 = vmax.f32 %v207, %v222
      %v237 = vmax.f32 %v208, %v223
      %v238 = vmax.f32 %v209, %v224
      %s239 = scalar_lea.vmem [#allocation2], 24
      %240 = vst.msk [vmem:[%s239 + $0x8] sm:$0xff] %vm164, %v225
      %241 = vst.msk [vmem:[%s239 + $0x10] sm:$0xff] %vm164, %v226
      %242 = vst.msk [vmem:[%s239 + $0x20] sm:$0xff] %vm164, %v227
      %243 = vst.msk [vmem:[%s239 + $0x28] sm:$0xff] %vm164, %v228
      %244 = vst.msk [vmem:[%s239 + $0x38] sm:$0xff] %vm164, %v229
      %245 = vst.msk [vmem:[%s239 + $0x40] sm:$0xff] %vm164, %v230
      %246 = vst.msk [vmem:[%s239 + $0x50] sm:$0xff] %vm164, %v231
      %247 = vst.msk [vmem:[%s239 + $0x58] sm:$0xff] %vm164, %v232
      %248 = vst.msk [vmem:[%s239 + $0x68] sm:$0xff] %vm164, %v233
      %249 = vst.msk [vmem:[%s239 + $0x70] sm:$0xff] %vm164, %v234
      %250 = vst.msk [vmem:[%s239 + $0x80] sm:$0xff] %vm164, %v235
      %251 = vst.msk [vmem:[%s239 + $0x88] sm:$0xff] %vm164, %v236
      %252 = vst.msk [vmem:[%s239 + $0x98] sm:$0xff] %vm164, %v237
      %253 = vst.msk [vmem:[%s239 + $0xa0] sm:$0xff] %vm164, %v238
      %s254 = scalar_lea.vmem [#allocation2], 7
      %v255 = vld [vmem:[%s254] ss:$2 sm:$0xff]
      %s256 = scalar_lea.vmem [#allocation2], 31
      %v257 = vld [vmem:[%s256] ss:$2 sm:$0xff]
      %s258 = scalar_lea.vmem [#allocation2], 55
      %v259 = vld [vmem:[%s258] ss:$2 sm:$0xff]
      %s260 = scalar_lea.vmem [#allocation2], 79
      %v261 = vld [vmem:[%s260] ss:$2 sm:$0xff]
      %s262 = scalar_lea.vmem [#allocation2], 103
      %v263 = vld [vmem:[%s262] ss:$2 sm:$0xff]
      %s264 = scalar_lea.vmem [#allocation2], 127
      %v265 = vld [vmem:[%s264] ss:$2 sm:$0xff]
      %s266 = scalar_lea.vmem [#allocation2], 151
      %v267 = vld [vmem:[%s266] ss:$2 sm:$0xff]
      %s268 = scalar_lea.vmem [#allocation2], 175
      %v269 = vld [vmem:[%s268] ss:$2 sm:$0xff]
      %s270 = scalar_lea.vmem [#allocation2], 8
      %v271 = vld [vmem:[%s270] ss:$2 sm:$0xff]
      %s272 = scalar_lea.vmem [#allocation2], 32
      %v273 = vld [vmem:[%s272] ss:$2 sm:$0xff]
      %s274 = scalar_lea.vmem [#allocation2], 56
      %v275 = vld [vmem:[%s274] ss:$2 sm:$0xff]
      %s276 = scalar_lea.vmem [#allocation2], 80
      %v277 = vld [vmem:[%s276] ss:$2 sm:$0xff]
      %s278 = scalar_lea.vmem [#allocation2], 104
      %v279 = vld [vmem:[%s278] ss:$2 sm:$0xff]
      %s280 = scalar_lea.vmem [#allocation2], 128
      %v281 = vld [vmem:[%s280] ss:$2 sm:$0xff]
      %s282 = scalar_lea.vmem [#allocation2], 152
      %v283 = vld [vmem:[%s282] ss:$2 sm:$0xff]
      %s284 = scalar_lea.vmem [#allocation2], 176
      %v285 = vld [vmem:[%s284] ss:$2 sm:$0xff]
      %v286 = vmax.f32 %v255, %v271
      %v287 = vmax.f32 %v257, %v273
      %v288 = vmax.f32 %v259, %v275
      %v289 = vmax.f32 %v261, %v277
      %v290 = vmax.f32 %v263, %v279
      %v291 = vmax.f32 %v265, %v281
      %v292 = vmax.f32 %v267, %v283
      %v293 = vmax.f32 %v269, %v285
      %s294 = scalar_lea.vmem [#allocation2], 9
      %v295 = vld [vmem:[%s294] ss:$2 sm:$0xff]
      %s296 = scalar_lea.vmem [#allocation2], 33
      %v297 = vld [vmem:[%s296] ss:$2 sm:$0xff]
      %s298 = scalar_lea.vmem [#allocation2], 57
      %v299 = vld [vmem:[%s298] ss:$2 sm:$0xff]
      %s300 = scalar_lea.vmem [#allocation2], 81
      %v301 = vld [vmem:[%s300] ss:$2 sm:$0xff]
      %s302 = scalar_lea.vmem [#allocation2], 105
      %v303 = vld [vmem:[%s302] ss:$2 sm:$0xff]
      %s304 = scalar_lea.vmem [#allocation2], 129
      %v305 = vld [vmem:[%s304] ss:$2 sm:$0xff]
      %s306 = scalar_lea.vmem [#allocation2], 153
      %v307 = vld [vmem:[%s306] ss:$2 sm:$0xff]
      %s308 = scalar_lea.vmem [#allocation2], 177
      %v309 = vld [vmem:[%s308] ss:$2 sm:$0xff]
      %v310 = vmax.f32 %v286, %v295
      %v311 = vmax.f32 %v287, %v297
      %v312 = vmax.f32 %v288, %v299
      %v313 = vmax.f32 %v289, %v301
      %v314 = vmax.f32 %v290, %v303
      %v315 = vmax.f32 %v291, %v305
      %v316 = vmax.f32 %v292, %v307
      %v317 = vmax.f32 %v293, %v309
      %318 = vst.msk [vmem:[%s147] sm:$0xff] %vm164, %v310
      %319 = vst.msk [vmem:[%s147 + $0x8] sm:$0xff] %vm164, %v311
      %320 = vst.msk [vmem:[%s147 + $0x10] sm:$0xff] %vm164, %v312
      %321 = vst.msk [vmem:[%s147 + $0x18] sm:$0xff] %vm164, %v313
      %322 = vst.msk [vmem:[%s147 + $0x20] sm:$0xff] %vm164, %v314
      %323 = vst.msk [vmem:[%s147 + $0x28] sm:$0xff] %vm164, %v315
      %324 = vst.msk [vmem:[%s147 + $0x30] sm:$0xff] %vm164, %v316
      %325 = vst.msk [vmem:[%s147 + $0x38] sm:$0xff] %vm164, %v317
      %p326 = scmp.lt.s32.totalorder %s16, 1
      %s327 = scalar_select %p326, %s16, 1
      %p328 = scmp.lt.s32.totalorder %s17, 0
      %s329 = scalar_select %p328, %s17, 0
      %s330 = smul.addr %s327, 8
      %s331 = sadd.s32 %s329, %s330
      %s332 = smul.addr %s331, 8
      %s333 = scalar_lea.vmem %s1, %s332
      // Predicated region
      $region25: #{tpu_custom_call.1} parent=23 // pred_check
        %p334 = pneg %p72
      $region26: #{tpu_custom_call.1} parent=23 // pred_check_branch
        %336 = sbr.rel (%p334) target = $region28
      $region27: #{tpu_custom_call.1} parent=23 // pred_region
        _
      $region28: #{tpu_custom_call.1} parent=23 // pred_fallthru
        _
    $region24: #{tpu_custom_call.1} parent=5 // pred_fallthru
      _
    %p337 = scmp.le.s32.totalorder 2, %s7
    // Predicated region
    $region29: #{tpu_custom_call.1} parent=5 // pred_check
      %p338 = pneg %p337
    $region30: #{tpu_custom_call.1} parent=5 // pred_check_branch
      %340 = sbr.rel (%p338) target = $region32
    $region31: #{tpu_custom_call.1} parent=5 // pred_region
      %s341 = ssub.s32 %s7, 2
      // Predicated region
      $region33: #{tpu_custom_call.1} parent=31 // pred_check
        %p342 = pneg %p78
      $region34: #{tpu_custom_call.1} parent=31 // pred_check_branch
        %344 = sbr.rel (%p342) target = $region36
      $region35: #{tpu_custom_call.1} parent=31 // pred_region
        %p345 = scmp.lt.s32.totalorder %s18, 1
        %s346 = scalar_select %p345, %s18, 1
        %p347 = scmp.lt.s32.totalorder %s19, 0
        %s348 = scalar_select %p347, %s19, 0
        %s349 = smul.addr %s346, 8
        %s350 = sadd.s32 %s348, %s349
        %s351 = smul.addr %s350, 8
        %s352 = scalar_lea.vmem %s1, %s351
      $region36: #{tpu_custom_call.1} parent=31 // pred_fallthru
        _
    $region32: #{tpu_custom_call.1} parent=5 // pred_fallthru
      _
  $region6: #{tpu_custom_call.1} parent=0 // loop_footer
    %s11 = sadd.s32 1, %s7
  $region7: #{tpu_custom_call.1} parent=0 // loop_footer_branch
    %6 = sbr.rel target = $region3
  $region8: #{tpu_custom_call.1} parent=0 // loop_exit
    _

</llo_original>
